<compile_context>
chip_gen: v7x
topology: tpu7x:2x2x1
jax: 0.10.0
libtpu: 0.0.40
codegen_flags: <defaults>
</compile_context>

<pallas_src>
from functools import partial

import jax
import jax.numpy as jnp
from jax.experimental import pallas as pl
from jax.experimental.pallas import tpu as pltpu


def _decoder_kernel(x_ref, w1_ref, w2_ref, w3_ref, w4_ref, o_ref):
    # x tile arrives already in bf16; all matmuls are bf16 x bf16 -> f32 (MXU),
    # elementwise epilogues run on the f32 accumulator (v5e-friendly).

    # Layer 1: (TB, latent) @ (latent, H)
    h = jnp.dot(x_ref[...], w1_ref[...], preferred_element_type=jnp.float32)
    h = jnp.maximum(h, 0.0).astype(jnp.bfloat16)

    # Layer 2: (TB, H) @ (H, 4H)
    h = jnp.dot(h, w2_ref[...], preferred_element_type=jnp.float32)
    h = jnp.maximum(h, 0.0).astype(jnp.bfloat16)

    # Layer 3: (TB, 4H) @ (4H, 16H)
    h = jnp.dot(h, w3_ref[...], preferred_element_type=jnp.float32)
    h = jnp.maximum(h, 0.0).astype(jnp.bfloat16)

    # Layer 4: (TB, 16H) @ (16H, image_size) -> sigmoid in f32.
    logits = jnp.dot(h, w4_ref[...], preferred_element_type=jnp.float32)
    o_ref[...] = jax.nn.sigmoid(logits).astype(o_ref.dtype)


def _round_up(n, m):
    return ((n + m - 1) // m) * m


def _cdiv(a, b):
    return (a + b - 1) // b


def _choose_tb(batch, block_b):
    """Balanced batch tile: multiple of 8, minimal padding, >=2 tiles for v7x."""
    b8 = _round_up(max(batch, 1), 8)
    # v7x has 2 TensorCores: once the batch is big enough, force >= 2 grid
    # steps so the "parallel" axis shards across both cores.
    min_tiles = 2 if b8 >= 256 else 1
    n_tiles = max(min_tiles, _cdiv(b8, block_b))
    return _round_up(_cdiv(b8, n_tiles), 8)


@partial(jax.jit, static_argnames=("block_b", "out_dtype"))
def decoder_forward(x, w1, w2, w3, w4, *, block_b=512, out_dtype=jnp.float32):
    """x: (B, latent); wN: (in, out), ideally already bf16. Returns (B, image)."""
    B, latent = x.shape
    image_size = w4.shape[1]

    TB = _choose_tb(B, block_b)
    B_pad = _round_up(B, TB)
    grid_b = B_pad // TB

    # Cast x once in the fused wrapper (halves x DMA, no in-kernel pack).
    xb = x.astype(jnp.bfloat16)
    if B_pad != B:
        xb = jnp.pad(xb, ((0, B_pad - B), (0, 0)))

    # No-ops if the caller already stores weights in bf16 (recommended).
    w1b = w1.astype(jnp.bfloat16)
    w2b = w2.astype(jnp.bfloat16)
    w3b = w3.astype(jnp.bfloat16)
    w4b = w4.astype(jnp.bfloat16)

    # Weights: full-array blocks, same block index every grid step -> resident.
    # Constant index_map => single buffer is enough (pl.Buffered(1)).
    def resident(w):
        return pl.BlockSpec(
            w.shape, lambda i: (0, 0), pipeline_mode=pl.Buffered(buffer_count=1)
        )

    out_itemsize = jnp.dtype(out_dtype).itemsize
    flops = 2 * B_pad * (
        w1.shape[0] * w1.shape[1]
        + w2.shape[0] * w2.shape[1]
        + w3.shape[0] * w3.shape[1]
        + w4.shape[0] * w4.shape[1]
    )
    bytes_accessed = (
        B_pad * latent * 2                                    # x (bf16)
        + 2 * (w1b.size + w2b.size + w3b.size + w4b.size)     # weights (bf16)
        + B_pad * image_size * out_itemsize                   # output
    )
    cost = pl.CostEstimate(
        flops=flops,
        transcendentals=B_pad * image_size,   # sigmoid exp
        bytes_accessed=bytes_accessed,
    )

    out = pl.pallas_call(
        _decoder_kernel,
        out_shape=jax.ShapeDtypeStruct((B_pad, image_size), out_dtype),
        grid_spec=pl.GridSpec(
            grid=(grid_b,),
            in_specs=[
                pl.BlockSpec((TB, latent), lambda i: (i, 0)),
                resident(w1b),
                resident(w2b),
                resident(w3b),
                resident(w4b),
            ],
            out_specs=pl.BlockSpec((TB, image_size), lambda i: (i, 0)),
        ),
        compiler_params=pltpu.CompilerParams(
            dimension_semantics=("parallel",),
        ),
        cost_estimate=cost,
    )(xb, w1b, w2b, w3b, w4b)

    return out[:B]


def _reference(x, w1, w2, w3, w4):
    h = jnp.maximum(x @ w1, 0.0)
    h = jnp.maximum(h @ w2, 0.0)
    h = jnp.maximum(h @ w3, 0.0)
    return jax.nn.sigmoid(h @ w4)


if __name__ == "__main__":
    # Small shapes consistent with the module's forward.
    batch = 8
    latent_size = 16
    hidden_size = 32
    image_size = 256

    key = jax.random.PRNGKey(0)
    kx, k1, k2, k3, k4 = jax.random.split(key, 5)

    x = jax.random.normal(kx, (batch, latent_size), dtype=jnp.float32)

    # Deterministic weight init; stored as (in_features, out_features),
    # i.e. already transposed relative to PyTorch's nn.Linear.weight.
    def init_w(k, fan_in, fan_out):
        bound = 1.0 / jnp.sqrt(fan_in)
        return jax.random.uniform(
            k, (fan_in, fan_out), minval=-bound, maxval=bound, dtype=jnp.float32
        )

    w1 = init_w(k1, latent_size, hidden_size)
    w2 = init_w(k2, hidden_size, 4 * hidden_size)
    w3 = init_w(k3, 4 * hidden_size, 16 * hidden_size)
    w4 = init_w(k4, 16 * hidden_size, image_size)

    # Per perf review: store the decoder weights in bf16 once at init time so
    # no per-call convert ops are launched; keep f32 only for the reference.
    w1b, w2b, w3b, w4b = (w.astype(jnp.bfloat16) for w in (w1, w2, w3, w4))

    out = decoder_forward(x, w1b, w2b, w3b, w4b)
    jax.block_until_ready(out)

    ref = _reference(x, w1, w2, w3, w4)
    assert out.shape == (batch, image_size)
    # bf16 matmuls (f32 accumulation) -> relaxed tolerance after sigmoid.
    assert jnp.allclose(out, ref, atol=2e-2, rtol=2e-2), float(
        jnp.max(jnp.abs(out - ref))
    )

    print("KERNEL_OK")
</pallas_src>

<mosaic_0001>
module attributes {stable_mosaic.version = 11 : i64} {
  func.func @_decoder_kernel(%arg0: i32, %arg1: memref<8x16xbf16, #tpu.memory_space<vmem>>, %arg2: memref<16x32xbf16, #tpu.memory_space<vmem>>, %arg3: memref<32x128xbf16, #tpu.memory_space<vmem>>, %arg4: memref<128x512xbf16, #tpu.memory_space<vmem>>, %arg5: memref<512x256xbf16, #tpu.memory_space<vmem>>, %arg6: memref<8x256xf32, #tpu.memory_space<vmem>>) attributes {dimension_semantics = [#tpu.dimension_semantics<parallel>], iteration_bounds = array<i64: 1>, scalar_prefetch = 0 : i64, scratch_operands = 0 : i64, tpu.core_type = #tpu.core_type<tc>, window_params = [{transform_indices = @transform_0, window_bounds = array<i64: 8, 16>}, {pipeline_mode = #tpu.pipeline_mode<synchronous>, transform_indices = @transform_1, window_bounds = array<i64: 16, 32>}, {pipeline_mode = #tpu.pipeline_mode<synchronous>, transform_indices = @transform_2, window_bounds = array<i64: 32, 128>}, {pipeline_mode = #tpu.pipeline_mode<synchronous>, transform_indices = @transform_3, window_bounds = array<i64: 128, 512>}, {pipeline_mode = #tpu.pipeline_mode<synchronous>, transform_indices = @transform_4, window_bounds = array<i64: 512, 256>}, {transform_indices = @transform_5, window_bounds = array<i64: 8, 256>}]} {
    %c0 = arith.constant 0 : index
    %c0_0 = arith.constant 0 : index
    %0 = vector.load %arg1[%c0, %c0_0] : memref<8x16xbf16, #tpu.memory_space<vmem>>, vector<8x16xbf16>
    %c0_1 = arith.constant 0 : index
    %c0_2 = arith.constant 0 : index
    %1 = vector.load %arg2[%c0_1, %c0_2] : memref<16x32xbf16, #tpu.memory_space<vmem>>, vector<16x32xbf16>
    %cst = arith.constant dense<0.000000e+00> : vector<8x32xf32>
    %2 = tpu.matmul %0, %1, %cst {dimension_numbers = #tpu.dot_dimension_numbers<[1], [0], [0], [1], [0, 0, 1, 1], [], []>} : vector<8x16xbf16>, vector<16x32xbf16>, vector<8x32xf32> -> vector<8x32xf32>
    %cst_3 = arith.constant 0.000000e+00 : f32
    %3 = vector.broadcast %cst_3 : f32 to vector<8x32xf32>
    %4 = arith.maximumf %2, %3 : vector<8x32xf32>
    %5 = arith.truncf %4 : vector<8x32xf32> to vector<8x32xbf16>
    %c0_4 = arith.constant 0 : index
    %c0_5 = arith.constant 0 : index
    %6 = vector.load %arg3[%c0_4, %c0_5] : memref<32x128xbf16, #tpu.memory_space<vmem>>, vector<32x128xbf16>
    %cst_6 = arith.constant dense<0.000000e+00> : vector<8x128xf32>
    %7 = tpu.matmul %5, %6, %cst_6 {dimension_numbers = #tpu.dot_dimension_numbers<[1], [0], [0], [1], [0, 0, 1, 1], [], []>} : vector<8x32xbf16>, vector<32x128xbf16>, vector<8x128xf32> -> vector<8x128xf32>
    %cst_7 = arith.constant 0.000000e+00 : f32
    %8 = vector.broadcast %cst_7 : f32 to vector<8x128xf32>
    %9 = arith.maximumf %7, %8 : vector<8x128xf32>
    %10 = arith.truncf %9 : vector<8x128xf32> to vector<8x128xbf16>
    %c0_8 = arith.constant 0 : index
    %c0_9 = arith.constant 0 : index
    %11 = vector.load %arg4[%c0_8, %c0_9] : memref<128x512xbf16, #tpu.memory_space<vmem>>, vector<128x512xbf16>
    %cst_10 = arith.constant dense<0.000000e+00> : vector<8x512xf32>
    %12 = tpu.matmul %10, %11, %cst_10 {dimension_numbers = #tpu.dot_dimension_numbers<[1], [0], [0], [1], [0, 0, 1, 1], [], []>} : vector<8x128xbf16>, vector<128x512xbf16>, vector<8x512xf32> -> vector<8x512xf32>
    %cst_11 = arith.constant 0.000000e+00 : f32
    %13 = vector.broadcast %cst_11 : f32 to vector<8x512xf32>
    %14 = arith.maximumf %12, %13 : vector<8x512xf32>
    %15 = arith.truncf %14 : vector<8x512xf32> to vector<8x512xbf16>
    %c0_12 = arith.constant 0 : index
    %c0_13 = arith.constant 0 : index
    %16 = vector.load %arg5[%c0_12, %c0_13] : memref<512x256xbf16, #tpu.memory_space<vmem>>, vector<512x256xbf16>
    %cst_14 = arith.constant dense<0.000000e+00> : vector<8x256xf32>
    %17 = tpu.matmul %15, %16, %cst_14 {dimension_numbers = #tpu.dot_dimension_numbers<[1], [0], [0], [1], [0, 0, 1, 1], [], []>} : vector<8x512xbf16>, vector<512x256xbf16>, vector<8x256xf32> -> vector<8x256xf32>
    %18 = arith.negf %17 : vector<8x256xf32>
    %19 = math.exp %18 : vector<8x256xf32>
    %cst_15 = arith.constant 1.000000e+00 : f32
    %20 = vector.broadcast %cst_15 : f32 to vector<8x256xf32>
    %21 = arith.addf %20, %19 : vector<8x256xf32>
    %22 = arith.divf %20, %21 : vector<8x256xf32>
    %c0_16 = arith.constant 0 : index
    %c0_17 = arith.constant 0 : index
    %23 = vector.load %arg6[%c0_16, %c0_17] : memref<8x256xf32, #tpu.memory_space<vmem>>, vector<8x256xf32>
    tpu.vector_store %arg6[%c0_16, %c0_17], %22 {strides = array<i32>} : memref<8x256xf32, #tpu.memory_space<vmem>>, vector<8x256xf32>,
    return
  }
  func.func @transform_0(%arg0: i32) -> (i32, i32) {
    %c0_i32 = arith.constant 0 : i32
    %c0_i32_0 = arith.constant 0 : i32
    return %arg0, %c0_i32 : i32, i32
  }
  func.func @transform_1(%arg0: i32) -> (i32, i32) {
    %c0_i32 = arith.constant 0 : i32
    %c0_i32_0 = arith.constant 0 : i32
    %c0_i32_1 = arith.constant 0 : i32
    return %c0_i32, %c0_i32_0 : i32, i32
  }
  func.func @transform_2(%arg0: i32) -> (i32, i32) {
    %c0_i32 = arith.constant 0 : i32
    %c0_i32_0 = arith.constant 0 : i32
    %c0_i32_1 = arith.constant 0 : i32
    return %c0_i32, %c0_i32_0 : i32, i32
  }
  func.func @transform_3(%arg0: i32) -> (i32, i32) {
    %c0_i32 = arith.constant 0 : i32
    %c0_i32_0 = arith.constant 0 : i32
    %c0_i32_1 = arith.constant 0 : i32
    return %c0_i32, %c0_i32_0 : i32, i32
  }
  func.func @transform_4(%arg0: i32) -> (i32, i32) {
    %c0_i32 = arith.constant 0 : i32
    %c0_i32_0 = arith.constant 0 : i32
    %c0_i32_1 = arith.constant 0 : i32
    return %c0_i32, %c0_i32_0 : i32, i32
  }
  func.func @transform_5(%arg0: i32) -> (i32, i32) {
    %c0_i32 = arith.constant 0 : i32
    %c0_i32_0 = arith.constant 0 : i32
    return %arg0, %c0_i32 : i32, i32
  }
}

</mosaic_0001>

<llo_original>
// kernel: decoder_forward.1
$region0: #{decoder_forward.1}
  #allocation0 [shape = 'u32[]', space=smem, size = 0x4, offset = 0x4, fixed_abs, tag = 'smem constant byte address 0x4 - core index']
  #allocation1 [shape = 'u32[144,128]{1,0:T(1,128)}', space=vmem, size = 0x12000, scoped, tag = 'internal scratch']
  %s0 = inlined_call_operand.vmem [shape: bf16[8,16], index: 0, kind: input, shape index: {}]
  %s1 = inlined_call_operand.hbm [shape: bf16[16,32], index: 1, kind: input, shape index: {}]
  %s2 = inlined_call_operand.vmem [shape: bf16[32,128], index: 2, kind: input, shape index: {}]
  %s3 = inlined_call_operand.hbm [shape: bf16[128,512], index: 3, kind: input, shape index: {}]
  %s4 = inlined_call_operand.hbm [shape: bf16[512,256], index: 4, kind: input, shape index: {}]
  %s5 = inlined_call_operand.hbm [shape: f32[8,256], index: 5, kind: output, shape index: {}]
  %s6 = sld [smem:[#allocation0]]
  $region42: #{decoder_forward.1} parent=0
    _
  %s8 = ssub.s32 1, %s6
  %s9 = scalar_select 0, %s8, %s6
  $region1: #{decoder_forward.1} parent=0
    #allocation2 [shape = 'u8[4096]{0}', space=vmem, size = 0x1000, scoped, tag = 'input window, operand 1, single buffered']
    #allocation3 [shape = 's32[1]{0}', space=sflag, size = 0x4, scoped, tag = 'scoped memory for decoder_forward.1']
    #allocation4 [shape = 's32[1]{0}', space=sflag, size = 0x4, scoped, tag = 'scoped memory for decoder_forward.1']
    #allocation5 [shape = 'u8[131072]{0}', space=vmem, size = 0x20000, scoped, tag = 'input window, operand 3, single buffered']
    #allocation6 [shape = 's32[1]{0}', space=sflag, size = 0x4, scoped, tag = 'scoped memory for decoder_forward.1']
    #allocation7 [shape = 'u8[262144]{0}', space=vmem, size = 0x40000, scoped, tag = 'input window, operand 4, single buffered']
    #allocation8 [shape = 'u8[8192]{0}', space=vmem, size = 0x2000, scoped, tag = 'output window, operand 0, single buffered']
    %10 = vsyncpa [#allocation3], 0
    %11 = vsyncpa [#allocation6], 0
    %12 = vsyncpa [#allocation4], 0
    // Predicated region
    $region2: #{decoder_forward.1} parent=1 // pred_check
      _
    $region3: #{decoder_forward.1} parent=1 // pred_check_branch
      %14 = sbr.rel (0) target = $region5
    $region4: #{decoder_forward.1} parent=1 // pred_region
      _
    $region5: #{decoder_forward.1} parent=1 // pred_fallthru
      _
    // Predicated region
    $region6: #{decoder_forward.1} parent=1 // pred_check
      _
    $region7: #{decoder_forward.1} parent=1 // pred_check_branch
      %16 = sbr.rel (0) target = $region9
    $region8: #{decoder_forward.1} parent=1 // pred_region
      %s18 = ssub.s32 128, 128
      %19 = vsyncadd [#allocation3], %s18
      %s20 = sshll.u32 [#allocation2], 4
      %s21 = int_to_ptr.vmem [resolvable:$true] %s20
      %26 = dma.hbm_to_vmem [thread:$0]  %s1, 128, %s21, [#allocation3], 64, 64, 4
    $region9: #{decoder_forward.1} parent=1 // pred_fallthru
      _
    // Predicated region
    $region10: #{decoder_forward.1} parent=1 // pred_check
      _
    $region11: #{decoder_forward.1} parent=1 // pred_check_branch
      %28 = sbr.rel (0) target = $region13
    $region12: #{decoder_forward.1} parent=1 // pred_region
      _
    $region13: #{decoder_forward.1} parent=1 // pred_fallthru
      _
    // Predicated region
    $region14: #{decoder_forward.1} parent=1 // pred_check
      _
    $region15: #{decoder_forward.1} parent=1 // pred_check_branch
      %30 = sbr.rel (0) target = $region17
    $region16: #{decoder_forward.1} parent=1 // pred_region
      %s32 = ssub.s32 4096, 4096
      %33 = vsyncadd [#allocation6], %s32
      %s34 = sshll.u32 [#allocation5], 4
      %s35 = int_to_ptr.vmem [resolvable:$true] %s34
      %40 = dma.hbm_to_vmem [thread:$0]  %s3, 4096, %s35, [#allocation6], 256, 256, 16
    $region17: #{decoder_forward.1} parent=1 // pred_fallthru
      _
    // Predicated region
    $region18: #{decoder_forward.1} parent=1 // pred_check
      _
    $region19: #{decoder_forward.1} parent=1 // pred_check_branch
      %42 = sbr.rel (0) target = $region21
    $region20: #{decoder_forward.1} parent=1 // pred_region
      %s44 = ssub.s32 8192, 8192
      %45 = vsyncadd [#allocation6], %s44
      %s46 = sshll.u32 [#allocation7], 4
      %s47 = int_to_ptr.vmem [resolvable:$true] %s46
      %52 = dma.hbm_to_vmem [thread:$0]  %s4, 8192, %s47, [#allocation6], 128, 128, 8
    $region21: #{decoder_forward.1} parent=1 // pred_fallthru
      _
    // Predicated region
    $region22: #{decoder_forward.1} parent=1 // pred_check
      _
    $region23: #{decoder_forward.1} parent=1 // pred_check_branch
      %54 = sbr.rel (0) target = $region25
    $region24: #{decoder_forward.1} parent=1 // pred_region
      %55 = dma.done [#allocation3], 128
    $region25: #{decoder_forward.1} parent=1 // pred_fallthru
      _
    // Predicated region
    $region26: #{decoder_forward.1} parent=1 // pred_check
      _
    $region27: #{decoder_forward.1} parent=1 // pred_check_branch
      %57 = sbr.rel (0) target = $region29
    $region28: #{decoder_forward.1} parent=1 // pred_region
      %58 = dma.done [#allocation6], 4096
    $region29: #{decoder_forward.1} parent=1 // pred_fallthru
      _
    // Predicated region
    $region30: #{decoder_forward.1} parent=1 // pred_check
      _
    $region31: #{decoder_forward.1} parent=1 // pred_check_branch
      %60 = sbr.rel (0) target = $region33
    $region32: #{decoder_forward.1} parent=1 // pred_region
      %61 = dma.done [#allocation6], 8192
    $region33: #{decoder_forward.1} parent=1 // pred_fallthru
      _
    %v63 = vld [vmem:[%s0] sm:$0xf]
    %v64 = vld [vmem:[#allocation2] sm:$0xf]
    %v65 = vld [vmem:[#allocation2 + $0x4] sm:$0xf]
    %v68 = vunpack.c.l.b16 %v64
    %v69 = vunpack.c.l.b16 %v65
    %v70 = vpack.c.b16 %v69, %v68
    %vm72 = vcmask 130048
    %v74 = vsel %vm72, %v63, 0
    %76 = vmatprep.subr.bf16.mxu0 0
    %77 = vmatpush1.bf16.msra.mxu0 %v70
    %78 = vmatprep.subr.bf16.mxu0 0
    %79 = vmatpush1.bf16.msra.mxu0 0
    %80 = vmatprep.subr.bf16.mxu0 0
    %81 = vmatpush1.bf16.msra.mxu0 0
    %82 = vmatprep.subr.bf16.mxu0 0
    %83 = vmatpush1.bf16.msra.mxu0 0
    %84 = vmatprep.subr.bf16.mxu0 0
    %85 = vmatpush1.bf16.msra.mxu0 0
    %86 = vmatprep.subr.bf16.mxu0 0
    %87 = vmatpush1.bf16.msra.mxu0 0
    %88 = vmatprep.subr.bf16.mxu0 0
    %89 = vmatpush1.bf16.msra.mxu0 0
    %90 = vmatprep.subr.bf16.mxu0 0
    %91 = vmatpush1.bf16.msra.mxu0 0
    %92 = vmatprep.subr.bf16.mxu0 0
    %93 = vmatpush1.bf16.msra.mxu0 0
    %94 = vmatprep.subr.bf16.mxu0 0
    %95 = vmatpush1.bf16.msra.mxu0 0
    %96 = vmatprep.subr.bf16.mxu0 0
    %97 = vmatpush1.bf16.msra.mxu0 0
    %98 = vmatprep.subr.bf16.mxu0 0
    %99 = vmatpush1.bf16.msra.mxu0 0
    %100 = vmatprep.subr.bf16.mxu0 0
    %101 = vmatpush1.bf16.msra.mxu0 0
    %102 = vmatprep.subr.bf16.mxu0 0
    %103 = vmatpush1.bf16.msra.mxu0 0
    %104 = vmatprep.subr.bf16.mxu0 0
    %105 = vmatpush1.bf16.msra.mxu0 0
    %106 = vmatprep.subr.bf16.mxu0 0
    %107 = vmatpush1.bf16.msra.mxu0 0
    %108 = vmatprep.mubr.bf16.mxu0 0
    %109 = vmatmul.mubr.bf16.gmra.mrb[0].mxu0 %v74
    %v110 = vpop.f32.mrb[0].mxu0
    %v111 = vadd.f32 0.0, %v110
    %v112 = vpop.f32.mrb[0].mxu0
    %v113 = vpop.f32.mrb[0].mxu0
    %v114 = vpop.f32.mrb[0].mxu0
    %115 = vdwg.mxu0
    %v116 = vmax.f32 %v111, 0.0
    %v117 = vpack.c.bf16 %v116, %v116
    %v118 = vld [vmem:[%s2] sm:$0xf]
    %v119 = vld [vmem:[%s2 + $0x4] sm:$0xf]
    %v120 = vld [vmem:[%s2 + $0x8] sm:$0xf]
    %v121 = vld [vmem:[%s2 + $0xc] sm:$0xf]
    %v126 = vunpack.c.l.b16 %v118
    %v127 = vunpack.c.l.b16 %v119
    %v128 = vunpack.c.l.b16 %v120
    %v129 = vunpack.c.l.b16 %v121
    %v130 = vpack.c.b16 %v127, %v126
    %v131 = vpack.c.b16 %v129, %v128
    %vm134 = vcmask 261120
    %v136 = vsel %vm134, %v117, 0
    %138 = vmatprep.subr.bf16.mxu0 0
    %139 = vmatpush1.bf16.msra.mxu0 %v130
    %140 = vmatprep.subr.bf16.mxu0 0
    %141 = vmatpush1.bf16.msra.mxu0 %v131
    %142 = vmatprep.subr.bf16.mxu0 0
    %143 = vmatpush1.bf16.msra.mxu0 0
    %144 = vmatprep.subr.bf16.mxu0 0
    %145 = vmatpush1.bf16.msra.mxu0 0
    %146 = vmatprep.subr.bf16.mxu0 0
    %147 = vmatpush1.bf16.msra.mxu0 0
    %148 = vmatprep.subr.bf16.mxu0 0
    %149 = vmatpush1.bf16.msra.mxu0 0
    %150 = vmatprep.subr.bf16.mxu0 0
    %151 = vmatpush1.bf16.msra.mxu0 0
    %152 = vmatprep.subr.bf16.mxu0 0
    %153 = vmatpush1.bf16.msra.mxu0 0
    %154 = vmatprep.subr.bf16.mxu0 0
    %155 = vmatpush1.bf16.msra.mxu0 0
    %156 = vmatprep.subr.bf16.mxu0 0
    %157 = vmatpush1.bf16.msra.mxu0 0
    %158 = vmatprep.subr.bf16.mxu0 0
    %159 = vmatpush1.bf16.msra.mxu0 0
    %160 = vmatprep.subr.bf16.mxu0 0
    %161 = vmatpush1.bf16.msra.mxu0 0
    %162 = vmatprep.subr.bf16.mxu0 0
    %163 = vmatpush1.bf16.msra.mxu0 0
    %164 = vmatprep.subr.bf16.mxu0 0
    %165 = vmatpush1.bf16.msra.mxu0 0
    %166 = vmatprep.subr.bf16.mxu0 0
    %167 = vmatpush1.bf16.msra.mxu0 0
    %168 = vmatprep.subr.bf16.mxu0 0
    %169 = vmatpush1.bf16.msra.mxu0 0
    %170 = vmatprep.mubr.bf16.mxu0 0
    %171 = vmatmul.mubr.bf16.gmra.mrb[0].mxu0 %v136
    %v172 = vpop.f32.mrb[0].mxu0
    %v173 = vadd.f32 0.0, %v172
    %v174 = vpop.f32.mrb[0].mxu0
    %v175 = vpop.f32.mrb[0].mxu0
    %v176 = vpop.f32.mrb[0].mxu0
    %177 = vdwg.mxu0
    %v178 = vmax.f32 %v173, 0.0
    %v179 = vpack.c.bf16 %v178, %v178
    %v180 = vld [vmem:[#allocation5] sm:$0xff]
    %v181 = vld [vmem:[#allocation5 + $0x8] sm:$0xff]
    %v182 = vld [vmem:[#allocation5 + $0x10] sm:$0xff]
    %v183 = vld [vmem:[#allocation5 + $0x18] sm:$0xff]
    %v184 = vld [vmem:[#allocation5 + $0x20] sm:$0xff]
    %v185 = vld [vmem:[#allocation5 + $0x28] sm:$0xff]
    %v186 = vld [vmem:[#allocation5 + $0x30] sm:$0xff]
    %v187 = vld [vmem:[#allocation5 + $0x38] sm:$0xff]
    %v188 = vld [vmem:[#allocation5 + $0x40] sm:$0xff]
    %v189 = vld [vmem:[#allocation5 + $0x48] sm:$0xff]
    %v190 = vld [vmem:[#allocation5 + $0x50] sm:$0xff]
    %v191 = vld [vmem:[#allocation5 + $0x58] sm:$0xff]
    %v192 = vld [vmem:[#allocation5 + $0x60] sm:$0xff]
    %v193 = vld [vmem:[#allocation5 + $0x68] sm:$0xff]
    %v194 = vld [vmem:[#allocation5 + $0x70] sm:$0xff]
    %v195 = vld [vmem:[#allocation5 + $0x78] sm:$0xff]
    %v196 = vld [vmem:[#allocation5 + $0x80] sm:$0xff]
    %v197 = vld [vmem:[#allocation5 + $0x88] sm:$0xff]
    %v198 = vld [vmem:[#allocation5 + $0x90] sm:$0xff]
    %v199 = vld [vmem:[#allocation5 + $0x98] sm:$0xff]
    %v200 = vld [vmem:[#allocation5 + $0xa0] sm:$0xff]
    %v201 = vld [vmem:[#allocation5 + $0xa8] sm:$0xff]
    %v202 = vld [vmem:[#allocation5 + $0xb0] sm:$0xff]
    %v203 = vld [vmem:[#allocation5 + $0xb8] sm:$0xff]
    %v204 = vld [vmem:[#allocation5 + $0xc0] sm:$0xff]
    %v205 = vld [vmem:[#allocation5 + $0xc8] sm:$0xff]
    %v206 = vld [vmem:[#allocation5 + $0xd0] sm:$0xff]
    %v207 = vld [vmem:[#allocation5 + $0xd8] sm:$0xff]
    %v208 = vld [vmem:[#allocation5 + $0xe0] sm:$0xff]
    %v209 = vld [vmem:[#allocation5 + $0xe8] sm:$0xff]
    %v210 = vld [vmem:[#allocation5 + $0xf0] sm:$0xff]
    %v211 = vld [vmem:[#allocation5 + $0xf8] sm:$0xff]
    %v244 = vunpack.c.l.b16 %v180
    %v245 = vunpack.c.h.b16 %v180
    %v246 = vunpack.c.l.b16 %v181
    %v247 = vunpack.c.h.b16 %v181
    %v248 = vunpack.c.l.b16 %v182
    %v249 = vunpack.c.h.b16 %v182
    %v250 = vunpack.c.l.b16 %v183
    %v251 = vunpack.c.h.b16 %v183
    %v252 = vunpack.c.l.b16 %v184
    %v253 = vunpack.c.h.b16 %v184
    %v254 = vunpack.c.l.b16 %v185
    %v255 = vunpack.c.h.b16 %v185
    %v256 = vunpack.c.l.b16 %v186
    %v257 = vunpack.c.h.b16 %v186
    %v258 = vunpack.c.l.b16 %v187
    %v259 = vunpack.c.h.b16 %v187
    %v260 = vunpack.c.l.b16 %v188
    %v261 = vunpack.c.h.b16 %v188
    %v262 = vunpack.c.l.b16 %v189
    %v263 = vunpack.c.h.b16 %v189
    %v264 = vunpack.c.l.b16 %v190
    %v265 = vunpack.c.h.b16 %v190
    %v266 = vunpack.c.l.b16 %v191
    %v267 = vunpack.c.h.b16 %v191
    %v268 = vunpack.c.l.b16 %v192
    %v269 = vunpack.c.h.b16 %v192
    %v270 = vunpack.c.l.b16 %v193
    %v271 = vunpack.c.h.b16 %v193
    %v272 = vunpack.c.l.b16 %v194
    %v273 = vunpack.c.h.b16 %v194
    %v274 = vunpack.c.l.b16 %v195
    %v275 = vunpack.c.h.b16 %v195
    %v276 = vunpack.c.l.b16 %v196
    %v277 = vunpack.c.h.b16 %v196
    %v278 = vunpack.c.l.b16 %v197
    %v279 = vunpack.c.h.b16 %v197
    %v280 = vunpack.c.l.b16 %v198
    %v281 = vunpack.c.h.b16 %v198
    %v282 = vunpack.c.l.b16 %v199
    %v283 = vunpack.c.h.b16 %v199
    %v284 = vunpack.c.l.b16 %v200
    %v285 = vunpack.c.h.b16 %v200
    %v286 = vunpack.c.l.b16 %v201
    %v287 = vunpack.c.h.b16 %v201
    %v288 = vunpack.c.l.b16 %v202
    %v289 = vunpack.c.h.b16 %v202
    %v290 = vunpack.c.l.b16 %v203
    %v291 = vunpack.c.h.b16 %v203
    %v292 = vunpack.c.l.b16 %v204
    %v293 = vunpack.c.h.b16 %v204
    %v294 = vunpack.c.l.b16 %v205
    %v295 = vunpack.c.h.b16 %v205
    %v296 = vunpack.c.l.b16 %v206
    %v297 = vunpack.c.h.b16 %v206
    %v298 = vunpack.c.l.b16 %v207
    %v299 = vunpack.c.h.b16 %v207
    %v300 = vunpack.c.l.b16 %v208
    %v301 = vunpack.c.h.b16 %v208
    %v302 = vunpack.c.l.b16 %v209
    %v303 = vunpack.c.h.b16 %v209
    %v304 = vunpack.c.l.b16 %v210
    %v305 = vunpack.c.h.b16 %v210
    %v306 = vunpack.c.l.b16 %v211
    %v307 = vunpack.c.h.b16 %v211
    %v308 = vpack.c.b16 %v248, %v244
    %v309 = vpack.c.b16 %v249, %v245
    %v310 = vpack.c.b16 %v250, %v246
    %v311 = vpack.c.b16 %v251, %v247
    %v312 = vpack.c.b16 %v256, %v252
    %v313 = vpack.c.b16 %v257, %v253
    %v314 = vpack.c.b16 %v258, %v254
    %v315 = vpack.c.b16 %v259, %v255
    %v316 = vpack.c.b16 %v264, %v260
    %v317 = vpack.c.b16 %v265, %v261
    %v318 = vpack.c.b16 %v266, %v262
    %v319 = vpack.c.b16 %v267, %v263
    %v320 = vpack.c.b16 %v272, %v268
    %v321 = vpack.c.b16 %v273, %v269
    %v322 = vpack.c.b16 %v274, %v270
    %v323 = vpack.c.b16 %v275, %v271
    %v324 = vpack.c.b16 %v280, %v276
    %v325 = vpack.c.b16 %v281, %v277
    %v326 = vpack.c.b16 %v282, %v278
    %v327 = vpack.c.b16 %v283, %v279
    %v328 = vpack.c.b16 %v288, %v284
    %v329 = vpack.c.b16 %v289, %v285
    %v330 = vpack.c.b16 %v290, %v286
    %v331 = vpack.c.b16 %v291, %v287
    %v332 = vpack.c.b16 %v296, %v292
    %v333 = vpack.c.b16 %v297, %v293
    %v334 = vpack.c.b16 %v298, %v294
    %v335 = vpack.c.b16 %v299, %v295
    %v336 = vpack.c.b16 %v304, %v300
    %v337 = vpack.c.b16 %v305, %v301
    %v338 = vpack.c.b16 %v306, %v302
    %v339 = vpack.c.b16 %v307, %v303
    %372 = vmatprep.subr.bf16.mxu0 %v309
    %373 = vmatpush1.bf16.msra.mxu0 %v308
    %374 = vmatprep.subr.bf16.mxu0 %v313
    %375 = vmatpush1.bf16.msra.mxu0 %v312
    %376 = vmatprep.subr.bf16.mxu0 %v317
    %377 = vmatpush1.bf16.msra.mxu0 %v316
    %378 = vmatprep.subr.bf16.mxu0 %v321
    %379 = vmatpush1.bf16.msra.mxu0 %v320
    %380 = vmatprep.subr.bf16.mxu0 %v325
    %381 = vmatpush1.bf16.msra.mxu0 %v324
    %382 = vmatprep.subr.bf16.mxu0 %v329
    %383 = vmatpush1.bf16.msra.mxu0 %v328
    %384 = vmatprep.subr.bf16.mxu0 %v333
    %385 = vmatpush1.bf16.msra.mxu0 %v332
    %386 = vmatprep.subr.bf16.mxu0 %v337
    %387 = vmatpush1.bf16.msra.mxu0 %v336
    %388 = vmatprep.subr.bf16.mxu0 0
    %389 = vmatpush1.bf16.msra.mxu0 0
    %390 = vmatprep.subr.bf16.mxu0 0
    %391 = vmatpush1.bf16.msra.mxu0 0
    %392 = vmatprep.subr.bf16.mxu0 0
    %393 = vmatpush1.bf16.msra.mxu0 0
    %394 = vmatprep.subr.bf16.mxu0 0
    %395 = vmatpush1.bf16.msra.mxu0 0
    %396 = vmatprep.subr.bf16.mxu0 0
    %397 = vmatpush1.bf16.msra.mxu0 0
    %398 = vmatprep.subr.bf16.mxu0 0
    %399 = vmatpush1.bf16.msra.mxu0 0
    %400 = vmatprep.subr.bf16.mxu0 0
    %401 = vmatpush1.bf16.msra.mxu0 0
    %402 = vmatprep.subr.bf16.mxu0 0
    %403 = vmatpush1.bf16.msra.mxu0 0
    %404 = vmatprep.mubr.bf16.mxu0 0
    %405 = vmatmul.mubr.bf16.gmra.mrb[0].mxu0 %v179
    %v406 = vpop.f32.mrb[0].mxu0
    %v407 = vadd.f32 0.0, %v406
    %v408 = vpop.f32.mrb[0].mxu0
    %v409 = vadd.f32 0.0, %v408
    %v410 = vpop.f32.mrb[0].mxu0
    %v411 = vpop.f32.mrb[0].mxu0
    %412 = vdwg.mxu0
    %413 = vmatprep.subr.bf16.mxu0 %v311
    %414 = vmatpush1.bf16.msra.mxu0 %v310
    %415 = vmatprep.subr.bf16.mxu0 %v315
    %416 = vmatpush1.bf16.msra.mxu0 %v314
    %417 = vmatprep.subr.bf16.mxu0 %v319
    %418 = vmatpush1.bf16.msra.mxu0 %v318
    %419 = vmatprep.subr.bf16.mxu0 %v323
    %420 = vmatpush1.bf16.msra.mxu0 %v322
    %421 = vmatprep.subr.bf16.mxu0 %v327
    %422 = vmatpush1.bf16.msra.mxu0 %v326
    %423 = vmatprep.subr.bf16.mxu0 %v331
    %424 = vmatpush1.bf16.msra.mxu0 %v330
    %425 = vmatprep.subr.bf16.mxu0 %v335
    %426 = vmatpush1.bf16.msra.mxu0 %v334
    %427 = vmatprep.subr.bf16.mxu0 %v339
    %428 = vmatpush1.bf16.msra.mxu0 %v338
    %429 = vmatprep.subr.bf16.mxu0 0
    %430 = vmatpush1.bf16.msra.mxu0 0
    %431 = vmatprep.subr.bf16.mxu0 0
    %432 = vmatpush1.bf16.msra.mxu0 0
    %433 = vmatprep.subr.bf16.mxu0 0
    %434 = vmatpush1.bf16.msra.mxu0 0
    %435 = vmatprep.subr.bf16.mxu0 0
    %436 = vmatpush1.bf16.msra.mxu0 0
    %437 = vmatprep.subr.bf16.mxu0 0
    %438 = vmatpush1.bf16.msra.mxu0 0
    %439 = vmatprep.subr.bf16.mxu0 0
    %440 = vmatpush1.bf16.msra.mxu0 0
    %441 = vmatprep.subr.bf16.mxu0 0
    %442 = vmatpush1.bf16.msra.mxu0 0
    %443 = vmatprep.subr.bf16.mxu0 0
    %444 = vmatpush1.bf16.msra.mxu0 0
    %445 = vmatprep.mubr.bf16.mxu0 0
    %446 = vmatmul.mubr.bf16.gmra.mrb[0].mxu0 %v179
    %v447 = vpop.f32.mrb[0].mxu0
    %v448 = vadd.f32 0.0, %v447
    %v449 = vpop.f32.mrb[0].mxu0
    %v450 = vadd.f32 0.0, %v449
    %v451 = vpop.f32.mrb[0].mxu0
    %v452 = vpop.f32.mrb[0].mxu0
    %453 = vdwg.mxu0
    %v454 = vmax.f32 %v407, 0.0
    %v455 = vmax.f32 %v409, 0.0
    %v456 = vmax.f32 %v448, 0.0
    %v457 = vmax.f32 %v450, 0.0
    %v458 = vpack.c.bf16 %v454, %v454
    %v459 = vpack.c.bf16 %v455, %v455
    %v460 = vpack.c.bf16 %v456, %v456
    %v461 = vpack.c.bf16 %v457, %v457
    %v462 = vld [vmem:[#allocation7] sm:$0xff]
    %v463 = vld [vmem:[#allocation7 + $0x8] sm:$0xff]
    %v464 = vld [vmem:[#allocation7 + $0x10] sm:$0xff]
    %v465 = vld [vmem:[#allocation7 + $0x18] sm:$0xff]
    %v466 = vld [vmem:[#allocation7 + $0x20] sm:$0xff]
    %v467 = vld [vmem:[#allocation7 + $0x28] sm:$0xff]
    %v468 = vld [vmem:[#allocation7 + $0x30] sm:$0xff]
    %v469 = vld [vmem:[#allocation7 + $0x38] sm:$0xff]
    %v470 = vld [vmem:[#allocation7 + $0x40] sm:$0xff]
    %v471 = vld [vmem:[#allocation7 + $0x48] sm:$0xff]
    %v472 = vld [vmem:[#allocation7 + $0x50] sm:$0xff]
    %v473 = vld [vmem:[#allocation7 + $0x58] sm:$0xff]
    %v474 = vld [vmem:[#allocation7 + $0x60] sm:$0xff]
    %v475 = vld [vmem:[#allocation7 + $0x68] sm:$0xff]
    %v476 = vld [vmem:[#allocation7 + $0x70] sm:$0xff]
    %v477 = vld [vmem:[#allocation7 + $0x78] sm:$0xff]
    %v478 = vld [vmem:[#allocation7 + $0x80] sm:$0xff]
    %v479 = vld [vmem:[#allocation7 + $0x88] sm:$0xff]
    %v480 = vld [vmem:[#allocation7 + $0x90] sm:$0xff]
    %v481 = vld [vmem:[#allocation7 + $0x98] sm:$0xff]
    %v482 = vld [vmem:[#allocation7 + $0xa0] sm:$0xff]
    %v483 = vld [vmem:[#allocation7 + $0xa8] sm:$0xff]
    %v484 = vld [vmem:[#allocation7 + $0xb0] sm:$0xff]
    %v485 = vld [vmem:[#allocation7 + $0xb8] sm:$0xff]
    %v486 = vld [vmem:[#allocation7 + $0xc0] sm:$0xff]
    %v487 = vld [vmem:[#allocation7 + $0xc8] sm:$0xff]
    %v488 = vld [vmem:[#allocation7 + $0xd0] sm:$0xff]
    %v489 = vld [vmem:[#allocation7 + $0xd8] sm:$0xff]
    %v490 = vld [vmem:[#allocation7 + $0xe0] sm:$0xff]
    %v491 = vld [vmem:[#allocation7 + $0xe8] sm:$0xff]
    %v492 = vld [vmem:[#allocation7 + $0xf0] sm:$0xff]
    %v493 = vld [vmem:[#allocation7 + $0xf8] sm:$0xff]
    %v494 = vld [vmem:[#allocation7 + $0x100] sm:$0xff]
    %v495 = vld [vmem:[#allocation7 + $0x108] sm:$0xff]
    %v496 = vld [vmem:[#allocation7 + $0x110] sm:$0xff]
    %v497 = vld [vmem:[#allocation7 + $0x118] sm:$0xff]
    %v498 = vld [vmem:[#allocation7 + $0x120] sm:$0xff]
    %v499 = vld [vmem:[#allocation7 + $0x128] sm:$0xff]
    %v500 = vld [vmem:[#allocation7 + $0x130] sm:$0xff]
    %v501 = vld [vmem:[#allocation7 + $0x138] sm:$0xff]
    %v502 = vld [vmem:[#allocation7 + $0x140] sm:$0xff]
    %v503 = vld [vmem:[#allocation7 + $0x148] sm:$0xff]
    %v504 = vld [vmem:[#allocation7 + $0x150] sm:$0xff]
    %v505 = vld [vmem:[#allocation7 + $0x158] sm:$0xff]
    %v506 = vld [vmem:[#allocation7 + $0x160] sm:$0xff]
    %v507 = vld [vmem:[#allocation7 + $0x168] sm:$0xff]
    %v508 = vld [vmem:[#allocation7 + $0x170] sm:$0xff]
    %v509 = vld [vmem:[#allocation7 + $0x178] sm:$0xff]
    %v510 = vld [vmem:[#allocation7 + $0x180] sm:$0xff]
    %v511 = vld [vmem:[#allocation7 + $0x188] sm:$0xff]
    %v512 = vld [vmem:[#allocation7 + $0x190] sm:$0xff]
    %v513 = vld [vmem:[#allocation7 + $0x198] sm:$0xff]
    %v514 = vld [vmem:[#allocation7 + $0x1a0] sm:$0xff]
    %v515 = vld [vmem:[#allocation7 + $0x1a8] sm:$0xff]
    %v516 = vld [vmem:[#allocation7 + $0x1b0] sm:$0xff]
    %v517 = vld [vmem:[#allocation7 + $0x1b8] sm:$0xff]
    %v518 = vld [vmem:[#allocation7 + $0x1c0] sm:$0xff]
    %v519 = vld [vmem:[#allocation7 + $0x1c8] sm:$0xff]
    %v520 = vld [vmem:[#allocation7 + $0x1d0] sm:$0xff]
    %v521 = vld [vmem:[#allocation7 + $0x1d8] sm:$0xff]
    %v522 = vld [vmem:[#allocation7 + $0x1e0] sm:$0xff]
    %v523 = vld [vmem:[#allocation7 + $0x1e8] sm:$0xff]
    %v524 = vld [vmem:[#allocation7 + $0x1f0] sm:$0xff]
    %v525 = vld [vmem:[#allocation7 + $0x1f8] sm:$0xff]
    %v590 = vunpack.c.l.b16 %v462
    %v591 = vunpack.c.h.b16 %v462
    %v592 = vunpack.c.l.b16 %v463
    %v593 = vunpack.c.h.b16 %v463
    %v594 = vunpack.c.l.b16 %v464
    %v595 = vunpack.c.h.b16 %v464
    %v596 = vunpack.c.l.b16 %v465
    %v597 = vunpack.c.h.b16 %v465
    %v598 = vunpack.c.l.b16 %v466
    %v599 = vunpack.c.h.b16 %v466
    %v600 = vunpack.c.l.b16 %v467
    %v601 = vunpack.c.h.b16 %v467
    %v602 = vunpack.c.l.b16 %v468
    %v603 = vunpack.c.h.b16 %v468
    %v604 = vunpack.c.l.b16 %v469
    %v605 = vunpack.c.h.b16 %v469
    %v606 = vunpack.c.l.b16 %v470
    %v607 = vunpack.c.h.b16 %v470
    %v608 = vunpack.c.l.b16 %v471
    %v609 = vunpack.c.h.b16 %v471
    %v610 = vunpack.c.l.b16 %v472
    %v611 = vunpack.c.h.b16 %v472
    %v612 = vunpack.c.l.b16 %v473
    %v613 = vunpack.c.h.b16 %v473
    %v614 = vunpack.c.l.b16 %v474
    %v615 = vunpack.c.h.b16 %v474
    %v616 = vunpack.c.l.b16 %v475
    %v617 = vunpack.c.h.b16 %v475
    %v618 = vunpack.c.l.b16 %v476
    %v619 = vunpack.c.h.b16 %v476
    %v620 = vunpack.c.l.b16 %v477
    %v621 = vunpack.c.h.b16 %v477
    %v622 = vunpack.c.l.b16 %v478
    %v623 = vunpack.c.h.b16 %v478
    %v624 = vunpack.c.l.b16 %v479
    %v625 = vunpack.c.h.b16 %v479
    %v626 = vunpack.c.l.b16 %v480
    %v627 = vunpack.c.h.b16 %v480
    %v628 = vunpack.c.l.b16 %v481
    %v629 = vunpack.c.h.b16 %v481
    %v630 = vunpack.c.l.b16 %v482
    %v631 = vunpack.c.h.b16 %v482
    %v632 = vunpack.c.l.b16 %v483
    %v633 = vunpack.c.h.b16 %v483
    %v634 = vunpack.c.l.b16 %v484
    %v635 = vunpack.c.h.b16 %v484
    %v636 = vunpack.c.l.b16 %v485
    %v637 = vunpack.c.h.b16 %v485
    %v638 = vunpack.c.l.b16 %v486
    %v639 = vunpack.c.h.b16 %v486
    %v640 = vunpack.c.l.b16 %v487
    %v641 = vunpack.c.h.b16 %v487
    %v642 = vunpack.c.l.b16 %v488
    %v643 = vunpack.c.h.b16 %v488
    %v644 = vunpack.c.l.b16 %v489
    %v645 = vunpack.c.h.b16 %v489
    %v646 = vunpack.c.l.b16 %v490
    %v647 = vunpack.c.h.b16 %v490
    %v648 = vunpack.c.l.b16 %v491
    %v649 = vunpack.c.h.b16 %v491
    %v650 = vunpack.c.l.b16 %v492
    %v651 = vunpack.c.h.b16 %v492
    %v652 = vunpack.c.l.b16 %v493
    %v653 = vunpack.c.h.b16 %v493
    %v654 = vunpack.c.l.b16 %v494
    %v655 = vunpack.c.h.b16 %v494
    %v656 = vunpack.c.l.b16 %v495
    %v657 = vunpack.c.h.b16 %v495
    %v658 = vunpack.c.l.b16 %v496
    %v659 = vunpack.c.h.b16 %v496
    %v660 = vunpack.c.l.b16 %v497
    %v661 = vunpack.c.h.b16 %v497
    %v662 = vunpack.c.l.b16 %v498
    %v663 = vunpack.c.h.b16 %v498
    %v664 = vunpack.c.l.b16 %v499
    %v665 = vunpack.c.h.b16 %v499
    %v666 = vunpack.c.l.b16 %v500
    %v667 = vunpack.c.h.b16 %v500
    %v668 = vunpack.c.l.b16 %v501
    %v669 = vunpack.c.h.b16 %v501
    %v670 = vunpack.c.l.b16 %v502
    %v671 = vunpack.c.h.b16 %v502
    %v672 = vunpack.c.l.b16 %v503
    %v673 = vunpack.c.h.b16 %v503
    %v674 = vunpack.c.l.b16 %v504
    %v675 = vunpack.c.h.b16 %v504
    %v676 = vunpack.c.l.b16 %v505
    %v677 = vunpack.c.h.b16 %v505
    %v678 = vunpack.c.l.b16 %v506
    %v679 = vunpack.c.h.b16 %v506
    %v680 = vunpack.c.l.b16 %v507
    %v681 = vunpack.c.h.b16 %v507
    %v682 = vunpack.c.l.b16 %v508
    %v683 = vunpack.c.h.b16 %v508
    %v684 = vunpack.c.l.b16 %v509
    %v685 = vunpack.c.h.b16 %v509
    %v686 = vunpack.c.l.b16 %v510
    %v687 = vunpack.c.h.b16 %v510
    %v688 = vunpack.c.l.b16 %v511
    %v689 = vunpack.c.h.b16 %v511
    %v690 = vunpack.c.l.b16 %v512
    %v691 = vunpack.c.h.b16 %v512
    %v692 = vunpack.c.l.b16 %v513
    %v693 = vunpack.c.h.b16 %v513
    %v694 = vunpack.c.l.b16 %v514
    %v695 = vunpack.c.h.b16 %v514
    %v696 = vunpack.c.l.b16 %v515
    %v697 = vunpack.c.h.b16 %v515
    %v698 = vunpack.c.l.b16 %v516
    %v699 = vunpack.c.h.b16 %v516
    %v700 = vunpack.c.l.b16 %v517
    %v701 = vunpack.c.h.b16 %v517
    %v702 = vunpack.c.l.b16 %v518
    %v703 = vunpack.c.h.b16 %v518
    %v704 = vunpack.c.l.b16 %v519
    %v705 = vunpack.c.h.b16 %v519
    %v706 = vunpack.c.l.b16 %v520
    %v707 = vunpack.c.h.b16 %v520
    %v708 = vunpack.c.l.b16 %v521
    %v709 = vunpack.c.h.b16 %v521
    %v710 = vunpack.c.l.b16 %v522
    %v711 = vunpack.c.h.b16 %v522
    %v712 = vunpack.c.l.b16 %v523
    %v713 = vunpack.c.h.b16 %v523
    %v714 = vunpack.c.l.b16 %v524
    %v715 = vunpack.c.h.b16 %v524
    %v716 = vunpack.c.l.b16 %v525
    %v717 = vunpack.c.h.b16 %v525
    %v718 = vpack.c.b16 %v592, %v590
    %v719 = vpack.c.b16 %v593, %v591
    %v720 = vpack.c.b16 %v596, %v594
    %v721 = vpack.c.b16 %v597, %v595
    %v722 = vpack.c.b16 %v600, %v598
    %v723 = vpack.c.b16 %v601, %v599
    %v724 = vpack.c.b16 %v604, %v602
    %v725 = vpack.c.b16 %v605, %v603
    %v726 = vpack.c.b16 %v608, %v606
    %v727 = vpack.c.b16 %v609, %v607
    %v728 = vpack.c.b16 %v612, %v610
    %v729 = vpack.c.b16 %v613, %v611
    %v730 = vpack.c.b16 %v616, %v614
    %v731 = vpack.c.b16 %v617, %v615
    %v732 = vpack.c.b16 %v620, %v618
    %v733 = vpack.c.b16 %v621, %v619
    %v734 = vpack.c.b16 %v624, %v622
    %v735 = vpack.c.b16 %v625, %v623
    %v736 = vpack.c.b16 %v628, %v626
    %v737 = vpack.c.b16 %v629, %v627
    %v738 = vpack.c.b16 %v632, %v630
    %v739 = vpack.c.b16 %v633, %v631
    %v740 = vpack.c.b16 %v636, %v634
    %v741 = vpack.c.b16 %v637, %v635
    %v742 = vpack.c.b16 %v640, %v638
    %v743 = vpack.c.b16 %v641, %v639
    %v744 = vpack.c.b16 %v644, %v642
    %v745 = vpack.c.b16 %v645, %v643
    %v746 = vpack.c.b16 %v648, %v646
    %v747 = vpack.c.b16 %v649, %v647
    %v748 = vpack.c.b16 %v652, %v650
    %v749 = vpack.c.b16 %v653, %v651
    %v750 = vpack.c.b16 %v656, %v654
    %v751 = vpack.c.b16 %v657, %v655
    %v752 = vpack.c.b16 %v660, %v658
    %v753 = vpack.c.b16 %v661, %v659
    %v754 = vpack.c.b16 %v664, %v662
    %v755 = vpack.c.b16 %v665, %v663
    %v756 = vpack.c.b16 %v668, %v666
    %v757 = vpack.c.b16 %v669, %v667
    %v758 = vpack.c.b16 %v672, %v670
    %v759 = vpack.c.b16 %v673, %v671
    %v760 = vpack.c.b16 %v676, %v674
    %v761 = vpack.c.b16 %v677, %v675
    %v762 = vpack.c.b16 %v680, %v678
    %v763 = vpack.c.b16 %v681, %v679
    %v764 = vpack.c.b16 %v684, %v682
    %v765 = vpack.c.b16 %v685, %v683
    %v766 = vpack.c.b16 %v688, %v686
    %v767 = vpack.c.b16 %v689, %v687
    %v768 = vpack.c.b16 %v692, %v690
    %v769 = vpack.c.b16 %v693, %v691
    %v770 = vpack.c.b16 %v696, %v694
    %v771 = vpack.c.b16 %v697, %v695
    %v772 = vpack.c.b16 %v700, %v698
    %v773 = vpack.c.b16 %v701, %v699
    %v774 = vpack.c.b16 %v704, %v702
    %v775 = vpack.c.b16 %v705, %v703
    %v776 = vpack.c.b16 %v708, %v706
    %v777 = vpack.c.b16 %v709, %v707
    %v778 = vpack.c.b16 %v712, %v710
    %v779 = vpack.c.b16 %v713, %v711
    %v780 = vpack.c.b16 %v716, %v714
    %v781 = vpack.c.b16 %v717, %v715
    %846 = vmatprep.subr.bf16.mxu0 %v719
    %847 = vmatpush1.bf16.msra.mxu0 %v718
    %848 = vmatprep.subr.bf16.mxu0 %v721
    %849 = vmatpush1.bf16.msra.mxu0 %v720
    %850 = vmatprep.subr.bf16.mxu0 %v723
    %851 = vmatpush1.bf16.msra.mxu0 %v722
    %852 = vmatprep.subr.bf16.mxu0 %v725
    %853 = vmatpush1.bf16.msra.mxu0 %v724
    %854 = vmatprep.subr.bf16.mxu0 %v727
    %855 = vmatpush1.bf16.msra.mxu0 %v726
    %856 = vmatprep.subr.bf16.mxu0 %v729
    %857 = vmatpush1.bf16.msra.mxu0 %v728
    %858 = vmatprep.subr.bf16.mxu0 %v731
    %859 = vmatpush1.bf16.msra.mxu0 %v730
    %860 = vmatprep.subr.bf16.mxu0 %v733
    %861 = vmatpush1.bf16.msra.mxu0 %v732
    %862 = vmatprep.subr.bf16.mxu0 %v735
    %863 = vmatpush1.bf16.msra.mxu0 %v734
    %864 = vmatprep.subr.bf16.mxu0 %v737
    %865 = vmatpush1.bf16.msra.mxu0 %v736
    %866 = vmatprep.subr.bf16.mxu0 %v739
    %867 = vmatpush1.bf16.msra.mxu0 %v738
    %868 = vmatprep.subr.bf16.mxu0 %v741
    %869 = vmatpush1.bf16.msra.mxu0 %v740
    %870 = vmatprep.subr.bf16.mxu0 %v743
    %871 = vmatpush1.bf16.msra.mxu0 %v742
    %872 = vmatprep.subr.bf16.mxu0 %v745
    %873 = vmatpush1.bf16.msra.mxu0 %v744
    %874 = vmatprep.subr.bf16.mxu0 %v747
    %875 = vmatpush1.bf16.msra.mxu0 %v746
    %876 = vmatprep.subr.bf16.mxu0 %v749
    %877 = vmatpush1.bf16.msra.mxu0 %v748
    %878 = vmatprep.mubr.bf16.mxu0 %v459
    %879 = vmatmul.mubr.bf16.gmra.mrb[0].mxu0 %v458
    %v880 = vpop.f32.mrb[0].mxu0
    %v881 = vadd.f32 0.0, %v880
    %v882 = vpop.f32.mrb[0].mxu0
    %v883 = vadd.f32 0.0, %v882
    %v884 = vpop.f32.mrb[0].mxu0
    %v885 = vpop.f32.mrb[0].mxu0
    %886 = vdwg.mxu0
    %887 = vmatprep.subr.bf16.mxu0 %v751
    %888 = vmatpush1.bf16.msra.mxu0 %v750
    %889 = vmatprep.subr.bf16.mxu0 %v753
    %890 = vmatpush1.bf16.msra.mxu0 %v752
    %891 = vmatprep.subr.bf16.mxu0 %v755
    %892 = vmatpush1.bf16.msra.mxu0 %v754
    %893 = vmatprep.subr.bf16.mxu0 %v757
    %894 = vmatpush1.bf16.msra.mxu0 %v756
    %895 = vmatprep.subr.bf16.mxu0 %v759
    %896 = vmatpush1.bf16.msra.mxu0 %v758
    %897 = vmatprep.subr.bf16.mxu0 %v761
    %898 = vmatpush1.bf16.msra.mxu0 %v760
    %899 = vmatprep.subr.bf16.mxu0 %v763
    %900 = vmatpush1.bf16.msra.mxu0 %v762
    %901 = vmatprep.subr.bf16.mxu0 %v765
    %902 = vmatpush1.bf16.msra.mxu0 %v764
    %903 = vmatprep.subr.bf16.mxu0 %v767
    %904 = vmatpush1.bf16.msra.mxu0 %v766
    %905 = vmatprep.subr.bf16.mxu0 %v769
    %906 = vmatpush1.bf16.msra.mxu0 %v768
    %907 = vmatprep.subr.bf16.mxu0 %v771
    %908 = vmatpush1.bf16.msra.mxu0 %v770
    %909 = vmatprep.subr.bf16.mxu0 %v773
    %910 = vmatpush1.bf16.msra.mxu0 %v772
    %911 = vmatprep.subr.bf16.mxu0 %v775
    %912 = vmatpush1.bf16.msra.mxu0 %v774
    %913 = vmatprep.subr.bf16.mxu0 %v777
    %914 = vmatpush1.bf16.msra.mxu0 %v776
    %915 = vmatprep.subr.bf16.mxu0 %v779
    %916 = vmatpush1.bf16.msra.mxu0 %v778
    %917 = vmatprep.subr.bf16.mxu0 %v781
    %918 = vmatpush1.bf16.msra.mxu0 %v780
    %919 = vmatprep.mubr.bf16.mxu0 %v461
    %920 = vmatmul.mubr.bf16.gmra.mrb[0].mxu0 %v460
    %v921 = vpop.f32.mrb[0].mxu0
    %v922 = vadd.f32 %v881, %v921
    %v923 = vpop.f32.mrb[0].mxu0
    %v924 = vadd.f32 %v883, %v923
    %v925 = vpop.f32.mrb[0].mxu0
    %v926 = vpop.f32.mrb[0].mxu0
    %927 = vdwg.mxu0
    %v928 = vxor.u32 %v922, 2147483648
    %v929 = vxor.u32 %v924, 2147483648
    %v930 = vmul.f32 %v928, 1.442695
    %v931 = vpow.pop %v930
    %v932 = vmul.f32 %v929, 1.442695
    %v933 = vpow.pop %v932
    %v934 = vadd.f32 %v931, 1.0
    %v935 = vadd.f32 %v933, 1.0
    %v936 = vrcp.pop %v934
    %v937 = vmul.f32 1.0, %v936
    %v938 = vrcp.pop %v935
    %v939 = vmul.f32 1.0, %v938
    %940 = vst [vmem:[#allocation8] sm:$0xff] %v937
    %941 = vst [vmem:[#allocation8 + $0x8] sm:$0xff] %v939
    // Predicated region
    $region34: #{decoder_forward.1} parent=1 // pred_check
      _
    $region35: #{decoder_forward.1} parent=1 // pred_check_branch
      %943 = sbr.rel (0) target = $region37
    $region36: #{decoder_forward.1} parent=1 // pred_region
      %s945 = ssub.s32 256, 256
      %946 = vsyncadd [#allocation4], %s945
      %s948 = sshll.u32 [#allocation8], 4
      %s949 = int_to_ptr.vmem [resolvable:$true] %s948
      %951 = dma.vmem_to_hbm [thread:$0]  %s949, 256, %s5, [#allocation4]
    $region37: #{decoder_forward.1} parent=1 // pred_fallthru
      _
    // Predicated region
    $region38: #{decoder_forward.1} parent=1 // pred_check
      _
    $region39: #{decoder_forward.1} parent=1 // pred_check_branch
      %953 = sbr.rel (0) target = $region41
    $region40: #{decoder_forward.1} parent=1 // pred_region
      %954 = dma.done [#allocation4], 256
    $region41: #{decoder_forward.1} parent=1 // pred_fallthru
      _
    %955 = vsyncpa [#allocation3], 1
    %956 = vsyncpa [#allocation6], 1
    %957 = vsyncpa [#allocation4], 1

</llo_original>
